<compile_context>
chip_gen: v7x
topology: tpu7x:2x2x1
jax: 0.10.0
libtpu: 0.0.40
codegen_flags: <defaults>
</compile_context>

<pallas_src>
import jax
import jax.numpy as jnp
from jax.experimental import pallas as pl
from jax.experimental.pallas import tpu as pltpu

LANE = 128          # vreg lane width
SUBLANE = 8         # f32 sublane count
MAX_BLOCK_ROWS = 1024   # (1024, 128) f32 tile = 512 KiB


def polynet_kernel(w_ref, x_ref, o_ref):
    # w_ref: SMEM (4,) f32              -- coef_ weights [w3, w2, w1, wc]
    # x_ref: VMEM (block_rows, 128) f32 -- lane-dense input tile
    # o_ref: VMEM (block_rows, 128) f32 -- lane-dense output tile
    x = x_ref[...]
    w3 = w_ref[0]
    w2 = w_ref[1]
    w1 = w_ref[2]
    wc = w_ref[3]
    # Horner form of w3*x^3 + w2*x^2 + w1*x + wc  (pure VPU path, no MXU)
    o_ref[...] = ((w3 * x + w2) * x + w1) * x + wc


def polynet_forward(x, w_flat, max_block_rows=MAX_BLOCK_ROWS):
    """x: (N, 1) f32, w_flat: (4,) f32 -> (N, 1) f32."""
    n = x.shape[0]
    flat = x.reshape(-1).astype(jnp.float32)
    total = flat.shape[0]

    # Rows at lane width 128, rounded up to a sublane (8) multiple.
    rows = pl.cdiv(max(total, 1), LANE)
    rows = pl.cdiv(rows, SUBLANE) * SUBLANE
    if rows <= max_block_rows:
        block_rows = rows                       # single tile
    else:
        block_rows = max_block_rows
        rows = pl.cdiv(rows, block_rows) * block_rows
    padded = rows * LANE

    flat = jnp.pad(flat, (0, padded - total))
    x2d = flat.reshape(rows, LANE)
    grid = (rows // block_rows,)

    out2d = pl.pallas_call(
        polynet_kernel,
        out_shape=jax.ShapeDtypeStruct((rows, LANE), jnp.float32),
        grid_spec=pltpu.PrefetchScalarGridSpec(
            num_scalar_prefetch=1,              # w_flat -> SMEM
            grid=grid,
            in_specs=[
                pl.BlockSpec((block_rows, LANE), lambda i, w: (i, 0)),
            ],
            out_specs=pl.BlockSpec((block_rows, LANE), lambda i, w: (i, 0)),
        ),
        compiler_params=pltpu.CompilerParams(
            dimension_semantics=("parallel",),
        ),
    )(w_flat, x2d)

    # Slice padded garbage rows away and restore the (N, 1) column layout.
    return out2d.reshape(-1)[:total].reshape(n, 1)


def polynet_reference(x, w_flat):
    feats = jnp.concatenate(
        [x * x * x, x * x, x, jnp.ones_like(x)], axis=1)      # (N, 4)
    return feats @ w_flat.reshape(4, 1)                        # (N, 1)


if __name__ == "__main__":
    key = jax.random.PRNGKey(0)
    k_w, k_x, k_x2 = jax.random.split(key, 3)

    # Deterministic parameter init, mirroring `param.data.uniform_(-0.05, 0.05)`
    # for coef_ = nn.Linear(4, 1, bias=False)  (weight shape (1, 4) -> flat (4,)).
    w_flat = jax.random.uniform(
        k_w, (4,), dtype=jnp.float32, minval=-0.05, maxval=0.05)

    # Toy-regression-sized batch of scalar inputs, shape (N, 1) like the
    # concatenated client data (30 + 20 + 50 = 100 points in [-7, 8]).
    n = 100
    x = jax.random.uniform(
        k_x, (n, 1), dtype=jnp.float32, minval=-7.0, maxval=8.0)

    out = polynet_forward(x, w_flat)
    out = jax.block_until_ready(out)
    ref = polynet_reference(x, w_flat)
    assert out.shape == (n, 1)
    assert jnp.allclose(out, ref, atol=1e-5, rtol=1e-5)

    # Exercise the multi-tile grid path (small shape, forced tiny tile).
    n2 = 5000
    x2 = jax.random.uniform(
        k_x2, (n2, 1), dtype=jnp.float32, minval=-7.0, maxval=8.0)
    out2 = polynet_forward(x2, w_flat, max_block_rows=16)
    out2 = jax.block_until_ready(out2)
    ref2 = polynet_reference(x2, w_flat)
    assert out2.shape == (n2, 1)
    assert jnp.allclose(out2, ref2, atol=1e-5, rtol=1e-5)

    # TODO(synk): aux_f / decode (NPNLinearLite + NPNSigmoid decoder) are not
    # part of PolyNet.forward and are left unimplemented.
    print("KERNEL_OK")
</pallas_src>

<mosaic_0001>
module attributes {stable_mosaic.version = 11 : i64} {
  func.func @polynet_kernel(%arg0: i32, %arg1: memref<4xf32, #tpu.memory_space<smem>>, %arg2: memref<8x128xf32, #tpu.memory_space<vmem>>, %arg3: memref<8x128xf32, #tpu.memory_space<vmem>>) attributes {dimension_semantics = [#tpu.dimension_semantics<parallel>], iteration_bounds = array<i64: 1>, scalar_prefetch = 1 : i64, scratch_operands = 0 : i64, tpu.core_type = #tpu.core_type<tc>, window_params = [{transform_indices = @transform_0, window_bounds = array<i64: 8, 128>}, {transform_indices = @transform_1, window_bounds = array<i64: 8, 128>}]} {
    %c0 = arith.constant 0 : index
    %c0_0 = arith.constant 0 : index
    %0 = vector.load %arg2[%c0, %c0_0] : memref<8x128xf32, #tpu.memory_space<vmem>>, vector<8x128xf32>
    %c0_1 = arith.constant 0 : index
    %1 = memref.load %arg1[%c0_1] : memref<4xf32, #tpu.memory_space<smem>>
    %c1 = arith.constant 1 : index
    %2 = memref.load %arg1[%c1] : memref<4xf32, #tpu.memory_space<smem>>
    %c2 = arith.constant 2 : index
    %3 = memref.load %arg1[%c2] : memref<4xf32, #tpu.memory_space<smem>>
    %c3 = arith.constant 3 : index
    %4 = memref.load %arg1[%c3] : memref<4xf32, #tpu.memory_space<smem>>
    %5 = vector.broadcast %1 : f32 to vector<8x128xf32>
    %6 = arith.mulf %5, %0 : vector<8x128xf32>
    %7 = vector.broadcast %2 : f32 to vector<8x128xf32>
    %8 = arith.addf %6, %7 : vector<8x128xf32>
    %9 = arith.mulf %8, %0 : vector<8x128xf32>
    %10 = vector.broadcast %3 : f32 to vector<8x128xf32>
    %11 = arith.addf %9, %10 : vector<8x128xf32>
    %12 = arith.mulf %11, %0 : vector<8x128xf32>
    %13 = vector.broadcast %4 : f32 to vector<8x128xf32>
    %14 = arith.addf %12, %13 : vector<8x128xf32>
    %c0_2 = arith.constant 0 : index
    %c0_3 = arith.constant 0 : index
    %15 = vector.load %arg3[%c0_2, %c0_3] : memref<8x128xf32, #tpu.memory_space<vmem>>, vector<8x128xf32>
    tpu.vector_store %arg3[%c0_2, %c0_3], %14 {strides = array<i32>} : memref<8x128xf32, #tpu.memory_space<vmem>>, vector<8x128xf32>,
    return
  }
  func.func @transform_0(%arg0: i32, %arg1: memref<4xf32, #tpu.memory_space<smem>>) -> (i32, i32) {
    %c0_i32 = arith.constant 0 : i32
    %c0_i32_0 = arith.constant 0 : i32
    return %arg0, %c0_i32 : i32, i32
  }
  func.func @transform_1(%arg0: i32, %arg1: memref<4xf32, #tpu.memory_space<smem>>) -> (i32, i32) {
    %c0_i32 = arith.constant 0 : i32
    %c0_i32_0 = arith.constant 0 : i32
    return %arg0, %c0_i32 : i32, i32
  }
}

</mosaic_0001>

<llo_original>
// kernel: tpu_custom_call.1
$region0: #{tpu_custom_call.1}
  #allocation0 [shape = 'u32[]', space=smem, size = 0x4, offset = 0x4, fixed_abs, tag = 'smem constant byte address 0x4 - core index']
  #allocation1 [shape = 'u32[144,128]{1,0:T(1,128)}', space=vmem, size = 0x12000, scoped, tag = 'internal scratch']
  #allocation2 [shape = 's32[1]{0}', space=sflag, size = 0x4, scoped, tag = 'scoped memory for tpu_custom_call.1']
  #allocation3 [shape = 'u8[512]{0}', space=smem, size = 0x200, scoped, tag = 'prefetched SMEM operand 0']
  %s0 = inlined_call_operand.hbm [shape: f32[4], index: 0, kind: input, shape index: {}]
  %s1 = inlined_call_operand.hbm [shape: f32[8,128], index: 1, kind: input, shape index: {}]
  %s2 = inlined_call_operand.hbm [shape: f32[8,128], index: 2, kind: output, shape index: {}]
  %s3 = sld [smem:[#allocation0]]
  $region18: #{tpu_custom_call.1} parent=0
    _
  %s5 = ssub.s32 1, %s3
  %s6 = scalar_select 0, %s5, %s3
  %8 = dma.hbm_to_smem %s0, 16, [#allocation3], [#allocation2]
  %9 = dma.done [#allocation2], 16
  %10 = sfence
  $region1: #{tpu_custom_call.1} parent=0
    #allocation4 [shape = 'u8[4096]{0}', space=vmem, size = 0x1000, scoped, tag = 'input window, operand 1, single buffered']
    #allocation5 [shape = 's32[1]{0}', space=sflag, size = 0x4, scoped, tag = 'scoped memory for tpu_custom_call.1']
    #allocation6 [shape = 's32[1]{0}', space=sflag, size = 0x4, scoped, tag = 'scoped memory for tpu_custom_call.1']
    #allocation7 [shape = 'u8[4096]{0}', space=vmem, size = 0x1000, scoped, tag = 'output window, operand 0, single buffered']
    %11 = vsyncpa [#allocation5], 0
    %12 = vsyncpa [#allocation6], 0
    // Predicated region
    $region2: #{tpu_custom_call.1} parent=1 // pred_check
      _
    $region3: #{tpu_custom_call.1} parent=1 // pred_check_branch
      %14 = sbr.rel (0) target = $region5
    $region4: #{tpu_custom_call.1} parent=1 // pred_region
      %s16 = ssub.s32 128, 128
      %17 = vsyncadd [#allocation5], %s16
      %s19 = sshll.u32 [#allocation4], 4
      %s20 = int_to_ptr.vmem [resolvable:$true] %s19
      %22 = dma.hbm_to_vmem [thread:$0]  %s1, 128, %s20, [#allocation5]
    $region5: #{tpu_custom_call.1} parent=1 // pred_fallthru
      _
    // Predicated region
    $region6: #{tpu_custom_call.1} parent=1 // pred_check
      _
    $region7: #{tpu_custom_call.1} parent=1 // pred_check_branch
      %24 = sbr.rel (0) target = $region9
    $region8: #{tpu_custom_call.1} parent=1 // pred_region
      %25 = dma.done [#allocation5], 128
    $region9: #{tpu_custom_call.1} parent=1 // pred_fallthru
      _
    %v26 = vld [vmem:[#allocation4] sm:$0xff]
    %s27 = sld [smem:[#allocation3]]
    %s28 = sld [smem:[#allocation3 + $0x1]]
    %s29 = sld [smem:[#allocation3 + $0x2]]
    %s30 = sld [smem:[#allocation3 + $0x3]]
    %v31 = vstv %s27
    %v32 = vmul.f32 %v31, %v26
    %v33 = vstv %s28
    %v34 = vadd.f32 %v32, %v33
    %v35 = vmul.f32 %v34, %v26
    %v36 = vstv %s29
    %v37 = vadd.f32 %v35, %v36
    %v38 = vmul.f32 %v37, %v26
    %v39 = vstv %s30
    %v40 = vadd.f32 %v38, %v39
    %41 = vst [vmem:[#allocation7] sm:$0xff] %v40
    // Predicated region
    $region10: #{tpu_custom_call.1} parent=1 // pred_check
      _
    $region11: #{tpu_custom_call.1} parent=1 // pred_check_branch
      %43 = sbr.rel (0) target = $region13
    $region12: #{tpu_custom_call.1} parent=1 // pred_region
      %s45 = ssub.s32 128, 128
      %46 = vsyncadd [#allocation6], %s45
      %s48 = sshll.u32 [#allocation7], 4
      %s49 = int_to_ptr.vmem [resolvable:$true] %s48
      %51 = dma.vmem_to_hbm [thread:$0]  %s49, 128, %s2, [#allocation6]
    $region13: #{tpu_custom_call.1} parent=1 // pred_fallthru
      _
    // Predicated region
    $region14: #{tpu_custom_call.1} parent=1 // pred_check
      _
    $region15: #{tpu_custom_call.1} parent=1 // pred_check_branch
      %53 = sbr.rel (0) target = $region17
    $region16: #{tpu_custom_call.1} parent=1 // pred_region
      %54 = dma.done [#allocation6], 128
    $region17: #{tpu_custom_call.1} parent=1 // pred_fallthru
      _
    %55 = vsyncpa [#allocation5], 1
    %56 = vsyncpa [#allocation6], 1

</llo_original>
